<compile_context>
chip_gen: v6e
topology: v6e:2x2x1
jax: 0.10.0
libtpu: 0.0.40
codegen_flags: <defaults>
</compile_context>

<pallas_src>
import jax
import jax.numpy as jnp
from jax import lax
from jax.experimental import pallas as pl
from jax.experimental.pallas import tpu as pltpu


LANES = 128
SUBLANES = 8
CHUNK_ROWS = 1024                 # per-iteration row chunk inside a tile (0.5 MiB f32)
DEFAULT_TILE_ROWS = 8192          # 4 MiB per f32 input block (safe on v5e/v6e/v7x)
BIG_VMEM_TILE_ROWS = 16384        # 8 MiB per block, only on 128-MiB-VMEM chips
MIN_PALLAS_ELEMS = 262144         # below this, plain XLA mean is faster
NUM_SPLITS = 2                    # leading "parallel" axis (v7x megacore); no-op on 1 TC


def _tile_config():
    """Pick (tile_rows, vmem_limit_bytes) based on the chip's VMEM capacity."""
    tile_rows = DEFAULT_TILE_ROWS
    vmem_limit = 32 * 1024 * 1024
    try:
        info = pltpu.get_tpu_info()
        if int(getattr(info, "vmem_capacity_bytes", 0)) >= 100 * 1024 * 1024:
            tile_rows = BIG_VMEM_TILE_ROWS        # v5e / v6e: 128 MiB physical VMEM
            vmem_limit = 64 * 1024 * 1024
    except Exception:
        pass
    return tile_rows, vmem_limit


def _make_sum_kernel(rows: int, tile_rows: int, steps_per_split: int,
                     chunk: int, ragged: bool):
    """Kernel accumulating sum(x - t) into a resident (1, 8, 128) f32 block."""
    n_full = tile_rows // chunk
    rem = tile_rows - n_full * chunk            # multiple of SUBLANES

    def _chunk_sum(x_ref, t_ref, r0, size):
        xs = x_ref[pl.ds(r0, size), :].astype(jnp.float32)
        ts = t_ref[pl.ds(r0, size), :].astype(jnp.float32)
        d = xs - ts
        return d.reshape(size // SUBLANES, SUBLANES, LANES).sum(axis=0)

    def _chunk_sum_masked(x_ref, t_ref, r0, size, limit):
        xs = x_ref[pl.ds(r0, size), :].astype(jnp.float32)
        ts = t_ref[pl.ds(r0, size), :].astype(jnp.float32)
        d = xs - ts
        # Compare a within-chunk iota against a scalar row budget (limit - r0);
        # rows past the budget (ragged tail / duplicated overflow step) -> 0.
        row_ids = lax.broadcasted_iota(jnp.int32, (size, LANES), 0)
        d = jnp.where(row_ids < (limit - r0), d, 0.0)
        return d.reshape(size // SUBLANES, SUBLANES, LANES).sum(axis=0)

    def kernel(x_ref, t_ref, acc_ref):
        c = pl.program_id(0)        # "parallel" split (TensorCore on v7x)
        i = pl.program_id(1)        # "arbitrary" reduction axis

        @pl.when(i == 0)
        def _():
            acc_ref[...] = jnp.zeros_like(acc_ref)

        def _accumulate(masked, limit=None):
            def body(j, acc):
                r0 = pl.multiple_of(j * chunk, chunk)
                if masked:
                    return acc + _chunk_sum_masked(x_ref, t_ref, r0, chunk, limit)
                return acc + _chunk_sum(x_ref, t_ref, r0, chunk)

            acc = jnp.zeros((SUBLANES, LANES), jnp.float32)
            if n_full == 1:
                acc = body(0, acc)
            elif n_full > 1:
                acc = lax.fori_loop(0, n_full, body, acc)
            if rem > 0:
                r0 = n_full * chunk
                if masked:
                    acc = acc + _chunk_sum_masked(x_ref, t_ref, r0, rem, limit)
                else:
                    acc = acc + _chunk_sum(x_ref, t_ref, r0, rem)
            acc_ref[...] += acc[jnp.newaxis]

        if ragged:
            # Unclamped per-step row budget: <= 0 for duplicated (clamped)
            # overflow steps, in (0, tile_rows) for the ragged last tile.
            limit = rows - (c * steps_per_split + i) * tile_rows

            @pl.when(limit >= tile_rows)          # full tile: no mask work
            def _():
                _accumulate(masked=False)

            @pl.when(limit < tile_rows)           # ragged / overflow step
            def _():
                _accumulate(masked=True, limit=limit)
        else:
            _accumulate(masked=False)

    return kernel


def _bulk_diff_sum(x2, t2, rows: int, tile_rows: int, vmem_limit: int):
    """Sum of (x2 - t2) over a (rows, 128) region via the Pallas kernel."""
    total_tiles = pl.cdiv(rows, tile_rows)
    splits = NUM_SPLITS if total_tiles >= NUM_SPLITS else 1
    steps = pl.cdiv(total_tiles, splits)
    # Any step needs masking iff the grid covers more rows than exist
    # (partial last tile and/or duplicated overflow steps).
    ragged = (splits * steps * tile_rows) != rows
    chunk = min(CHUNK_ROWS, tile_rows)

    def in_map(c, i):
        t = c * steps + i
        if splits * steps != total_tiles:
            # Keep the DMA in bounds; duplicated work is masked in-kernel.
            t = jnp.minimum(t, total_tiles - 1)
        return (t, 0)

    kernel = _make_sum_kernel(rows, tile_rows, steps, chunk, ragged)

    partials = pl.pallas_call(
        kernel,
        out_shape=jax.ShapeDtypeStruct((splits, SUBLANES, LANES), jnp.float32),
        grid_spec=pltpu.PrefetchScalarGridSpec(
            num_scalar_prefetch=0,
            grid=(splits, steps),
            in_specs=[
                pl.BlockSpec((tile_rows, LANES), in_map),
                pl.BlockSpec((tile_rows, LANES), in_map),
            ],
            out_specs=pl.BlockSpec((1, SUBLANES, LANES), lambda c, i: (c, 0, 0)),
        ),
        compiler_params=pltpu.CompilerParams(
            dimension_semantics=("parallel", "arbitrary"),
            vmem_limit_bytes=vmem_limit,
        ),
    )(x2, t2)

    # Single small cross-split + cross-lane/sublane reduction, once per call.
    return jnp.sum(partials)


def loss_forward(inp, tgt, *, max_tile_rows=None, min_pallas_elems=MIN_PALLAS_ELEMS):
    """Equivalent of Loss.forward: mean(input.view(-1) - target.view(-1))."""
    assert inp.shape == tgt.shape, "input/target must have matching shapes"
    out_dtype = jnp.promote_types(inp.dtype, tgt.dtype)
    if not jnp.issubdtype(out_dtype, jnp.floating):
        out_dtype = jnp.float32          # PyTorch mean is float-valued

    x = inp.reshape(-1)
    t = tgt.reshape(-1)
    n = x.shape[0]
    assert n > 0

    if n < min_pallas_elems:
        # Tiny inputs: one fused XLA reduction beats kernel-launch overhead.
        return jnp.mean(x.astype(jnp.float32) - t.astype(jnp.float32)).astype(out_dtype)

    cfg_tile_rows, vmem_limit = _tile_config()
    if max_tile_rows is None:
        max_tile_rows = cfg_tile_rows
    assert max_tile_rows > 0 and max_tile_rows % SUBLANES == 0

    chunk_elems = SUBLANES * LANES              # 1024 elements
    n_bulk = (n // chunk_elems) * chunk_elems   # bulk handled by the kernel
    rows = n_bulk // LANES                      # always a multiple of 8

    total = jnp.zeros((), jnp.float32)

    if rows > 0:
        tile_rows = min(max_tile_rows, rows)    # multiple of 8, never > rows
        x2 = x[:n_bulk].reshape(rows, LANES)
        t2 = t[:n_bulk].reshape(rows, LANES)
        total = total + _bulk_diff_sum(x2, t2, rows, tile_rows, vmem_limit)

    if n_bulk < n:
        # Ragged tail (< 1024 elements): negligible, reduce in plain JAX.
        tail = x[n_bulk:].astype(jnp.float32) - t[n_bulk:].astype(jnp.float32)
        total = total + jnp.sum(tail)

    return (total / jnp.float32(n)).astype(out_dtype)


if __name__ == "__main__":
    key = jax.random.PRNGKey(0)
    k1, k2, k3, k4 = jax.random.split(key, 4)

    def _check(a, b, **kw):
        got = jax.block_until_ready(loss_forward(a, b, **kw))
        ref = jnp.mean(a.reshape(-1).astype(jnp.float32)
                       - b.reshape(-1).astype(jnp.float32))
        assert jnp.allclose(got, ref, atol=1e-5, rtol=1e-5), (got, ref)

    # 1) Canonical small NCHW shape; force the Pallas path (single tile).
    shape = (2, 4, 16, 16)
    a = jax.random.normal(k1, shape, jnp.float32)
    b = jax.random.normal(k2, shape, jnp.float32)
    _check(a, b, min_pallas_elems=0)

    # 2) Multi-tile + 2-way parallel split + clamped overflow step (24 rows, 8-row tiles).
    shape2 = (3, 8, 128)
    c = jax.random.normal(k3, shape2, jnp.float32)
    d = jax.random.normal(k4, shape2, jnp.float32)
    _check(c, d, max_tile_rows=8, min_pallas_elems=0)

    # 3) Ragged last tile + overflow step + <1024-element plain-JAX tail.
    shape3 = (41, 129)          # 5289 elems -> 40 bulk rows (tiles 16,16,8) + 169 tail
    e = jax.random.normal(k1, shape3, jnp.float32)
    f = jax.random.normal(k2, shape3, jnp.float32)
    _check(e, f, max_tile_rows=16, min_pallas_elems=0)

    # 4) Above the small-input threshold: default tile configuration end-to-end.
    shape4 = (2, 4, 256, 256)   # 524288 elements
    g = jax.random.normal(k3, shape4, jnp.float32)
    h = jax.random.normal(k4, shape4, jnp.float32)
    _check(g, h)

    # 5) Tiny-input fast path (no Pallas call) with the default threshold.
    _check(a, b)

    print("KERNEL_OK")
</pallas_src>

<mosaic_0001>
module attributes {stable_mosaic.version = 11 : i64} {
  func.func @kernel(%arg0: i32, %arg1: i32, %arg2: memref<16x128xf32, #tpu.memory_space<vmem>>, %arg3: memref<16x128xf32, #tpu.memory_space<vmem>>, %arg4: memref<1x8x128xf32, #tpu.memory_space<vmem>>) attributes {dimension_semantics = [#tpu.dimension_semantics<parallel>, #tpu.dimension_semantics<arbitrary>], iteration_bounds = array<i64: 1, 1>, scalar_prefetch = 0 : i64, scratch_operands = 0 : i64, tpu.core_type = #tpu.core_type<tc>, window_params = [{transform_indices = @transform_0, window_bounds = array<i64: 16, 128>}, {transform_indices = @transform_1, window_bounds = array<i64: 16, 128>}, {transform_indices = @transform_2, window_bounds = array<i64: 1, 8, 128>}]} {
    %c0_i32 = arith.constant 0 : i32
    %0 = arith.cmpi eq, %arg1, %c0_i32 : i32
    %1 = arith.extui %0 : i1 to i32
    %c0_i32_0 = arith.constant 0 : i32
    %2 = arith.cmpi ne, %1, %c0_i32_0 : i32
    scf.if %2 {
      %cst_10 = arith.constant 0.000000e+00 : f32
      %17 = vector.broadcast %cst_10 : f32 to vector<1x8x128xf32>
      %c0_11 = arith.constant 0 : index
      %c0_12 = arith.constant 0 : index
      %c0_13 = arith.constant 0 : index
      %18 = vector.load %arg4[%c0_11, %c0_12, %c0_13] : memref<1x8x128xf32, #tpu.memory_space<vmem>>, vector<1x8x128xf32>
      tpu.vector_store %arg4[%c0_11, %c0_12, %c0_13], %17 {strides = array<i32>} : memref<1x8x128xf32, #tpu.memory_space<vmem>>, vector<1x8x128xf32>,
    } else {
    }
    %cst = arith.constant 0.000000e+00 : f32
    %3 = vector.broadcast %cst : f32 to vector<8x128xf32>
    %c0_i32_1 = arith.constant 0 : i32
    %4 = tpu.assume_multiple %c0_i32_1, 16 : i32
    %5 = arith.index_cast %4 : i32 to index
    %c0 = arith.constant 0 : index
    %6 = vector.load %arg2[%5, %c0] : memref<16x128xf32, #tpu.memory_space<vmem>>, vector<16x128xf32>
    %7 = arith.index_cast %4 : i32 to index
    %c0_2 = arith.constant 0 : index
    %8 = vector.load %arg3[%7, %c0_2] : memref<16x128xf32, #tpu.memory_space<vmem>>, vector<16x128xf32>
    %9 = arith.subf %6, %8 : vector<16x128xf32>
    %10 = vector.shape_cast %9 : vector<16x128xf32> to vector<2x8x128xf32>
    %cst_3 = arith.constant dense<0.000000e+00> : vector<8x128xf32>
    %11 = vector.multi_reduction <add>, %10, %cst_3 [0] : vector<2x8x128xf32> to vector<8x128xf32>
    %12 = arith.addf %3, %11 : vector<8x128xf32>
    %c0_4 = arith.constant 0 : index
    %c0_5 = arith.constant 0 : index
    %c0_6 = arith.constant 0 : index
    %13 = vector.load %arg4[%c0_4, %c0_5, %c0_6] : memref<1x8x128xf32, #tpu.memory_space<vmem>>, vector<1x8x128xf32>
    %14 = vector.shape_cast %12 : vector<8x128xf32> to vector<1x8x128xf32>
    %15 = arith.addf %13, %14 : vector<1x8x128xf32>
    %c0_7 = arith.constant 0 : index
    %c0_8 = arith.constant 0 : index
    %c0_9 = arith.constant 0 : index
    %16 = vector.load %arg4[%c0_7, %c0_8, %c0_9] : memref<1x8x128xf32, #tpu.memory_space<vmem>>, vector<1x8x128xf32>
    tpu.vector_store %arg4[%c0_7, %c0_8, %c0_9], %15 {strides = array<i32>} : memref<1x8x128xf32, #tpu.memory_space<vmem>>, vector<1x8x128xf32>,
    return
  }
  func.func @transform_0(%arg0: i32, %arg1: i32) -> (i32, i32) {
    %c1_i32 = arith.constant 1 : i32
    %0 = arith.muli %arg0, %c1_i32 : i32
    %1 = arith.addi %0, %arg1 : i32
    %c0_i32 = arith.constant 0 : i32
    %c0_i32_0 = arith.constant 0 : i32
    return %1, %c0_i32 : i32, i32
  }
  func.func @transform_1(%arg0: i32, %arg1: i32) -> (i32, i32) {
    %c1_i32 = arith.constant 1 : i32
    %0 = arith.muli %arg0, %c1_i32 : i32
    %1 = arith.addi %0, %arg1 : i32
    %c0_i32 = arith.constant 0 : i32
    %c0_i32_0 = arith.constant 0 : i32
    return %1, %c0_i32 : i32, i32
  }
  func.func @transform_2(%arg0: i32, %arg1: i32) -> (i32, i32, i32) {
    %c0_i32 = arith.constant 0 : i32
    %c0_i32_0 = arith.constant 0 : i32
    %c0_i32_1 = arith.constant 0 : i32
    return %arg0, %c0_i32, %c0_i32_0 : i32, i32, i32
  }
}

</mosaic_0001>

<llo_original>
// kernel: tpu_custom_call.1
$region0: #{tpu_custom_call.1}
  #allocation0 [shape = 'u32[]', space=smem, size = 0x4, offset = 0x4, fixed_abs, tag = 'smem constant byte address 0x4 - core index']
  #allocation1 [shape = 'u32[144,128]{1,0:T(1,128)}', space=vmem, size = 0x12000, scoped, tag = 'internal scratch']
  %s0 = inlined_call_operand.hbm [shape: f32[16,128], index: 0, kind: input, shape index: {}]
  %s1 = inlined_call_operand.hbm [shape: f32[16,128], index: 1, kind: input, shape index: {}]
  %s2 = inlined_call_operand.hbm [shape: f32[1,8,128], index: 2, kind: output, shape index: {}]
  %s3 = sld [smem:[#allocation0]]
  $region30: #{tpu_custom_call.1} parent=0
    _
  %s5 = ssub.s32 1, %s3
  %s6 = scalar_select 0, %s5, %s3
  $region1: #{tpu_custom_call.1} parent=0
    #allocation2 [shape = 'u8[8192]{0}', space=vmem, size = 0x2000, scoped, tag = 'input window, operand 0, single buffered']
    #allocation3 [shape = 's32[1]{0}', space=sflag, size = 0x4, scoped, tag = 'scoped memory for tpu_custom_call.1']
    #allocation4 [shape = 's32[1]{0}', space=sflag, size = 0x4, scoped, tag = 'scoped memory for tpu_custom_call.1']
    #allocation5 [shape = 'u8[8192]{0}', space=vmem, size = 0x2000, scoped, tag = 'input window, operand 1, single buffered']
    #allocation6 [shape = 's32[1]{0}', space=sflag, size = 0x4, scoped, tag = 'scoped memory for tpu_custom_call.1']
    #allocation7 [shape = 'u8[4096]{0}', space=vmem, size = 0x1000, scoped, tag = 'output window, operand 0, single buffered']
    %7 = vsyncpa [#allocation3], 0
    %8 = vsyncpa [#allocation6], 0
    %9 = vsyncpa [#allocation4], 0
    // Predicated region
    $region2: #{tpu_custom_call.1} parent=1 // pred_check
      _
    $region3: #{tpu_custom_call.1} parent=1 // pred_check_branch
      %11 = sbr.rel (0) target = $region5
    $region4: #{tpu_custom_call.1} parent=1 // pred_region
      %s12 = sadd.s32 0, 0
      %s13 = smul.u32 2, %s12
      %s15 = ssub.s32 256, 256
      %16 = vsyncadd [#allocation3], %s15
      %s17 = smul.addr %s13, 128
      %s18 = scalar_lea.hbm %s0, %s17
      %s19 = sshll.u32 [#allocation2], 4
      %s20 = int_to_ptr.vmem [resolvable:$true] %s19
      %25 = dma.hbm_to_vmem [thread:$0]  %s18, 256, %s20, [#allocation3], 128, 128, 8
    $region5: #{tpu_custom_call.1} parent=1 // pred_fallthru
      _
    // Predicated region
    $region6: #{tpu_custom_call.1} parent=1 // pred_check
      _
    $region7: #{tpu_custom_call.1} parent=1 // pred_check_branch
      %27 = sbr.rel (0) target = $region9
    $region8: #{tpu_custom_call.1} parent=1 // pred_region
      %s28 = sadd.s32 0, 0
      %s29 = smul.u32 2, %s28
      %s31 = ssub.s32 256, 256
      %32 = vsyncadd [#allocation6], %s31
      %s33 = smul.addr %s29, 128
      %s34 = scalar_lea.hbm %s1, %s33
      %s35 = sshll.u32 [#allocation5], 4
      %s36 = int_to_ptr.vmem [resolvable:$true] %s35
      %41 = dma.hbm_to_vmem [thread:$0]  %s34, 256, %s36, [#allocation6], 128, 128, 8
    $region9: #{tpu_custom_call.1} parent=1 // pred_fallthru
      _
    // Predicated region
    $region10: #{tpu_custom_call.1} parent=1 // pred_check
      _
    $region11: #{tpu_custom_call.1} parent=1 // pred_check_branch
      %43 = sbr.rel (0) target = $region13
    $region12: #{tpu_custom_call.1} parent=1 // pred_region
      %44 = dma.done [#allocation3], 256
    $region13: #{tpu_custom_call.1} parent=1 // pred_fallthru
      _
    // Predicated region
    $region14: #{tpu_custom_call.1} parent=1 // pred_check
      _
    $region15: #{tpu_custom_call.1} parent=1 // pred_check_branch
      %46 = sbr.rel (0) target = $region17
    $region16: #{tpu_custom_call.1} parent=1 // pred_region
      %47 = dma.done [#allocation6], 256
    $region17: #{tpu_custom_call.1} parent=1 // pred_fallthru
      _
    %s48 = sadd.s32 0, 0
    %s49 = smul.u32 2, %s48
    %s50 = sadd.s32 0, 0
    %s51 = smul.u32 2, %s50
    %p52 = scmp.eq.s32.totalorder 0, 0
    // Predicated region
    $region18: #{tpu_custom_call.1} parent=1 // pred_check
      %p53 = pneg %p52
    $region19: #{tpu_custom_call.1} parent=1 // pred_check_branch
      %55 = sbr.rel (%p53) target = $region21
    $region20: #{tpu_custom_call.1} parent=1 // pred_region
      %56 = vst [vmem:[#allocation7] sm:$0xff] 0.0
    $region21: #{tpu_custom_call.1} parent=1 // pred_fallthru
      _
    %v57 = vld [vmem:[#allocation2] sm:$0xff]
    %v58 = vld [vmem:[#allocation2 + $0x8] sm:$0xff]
    %v59 = vld [vmem:[#allocation5] sm:$0xff]
    %v60 = vld [vmem:[#allocation5 + $0x8] sm:$0xff]
    %v61 = vsub.f32 %v57, %v59
    %v62 = vsub.f32 %v58, %v60
    %v63 = vadd.f32 %v61, %v62
    %v64 = vadd.f32 %v63, 0.0
    %v65 = vld [vmem:[#allocation7] sm:$0xff]
    %v66 = vadd.f32 %v65, %v64
    %67 = vst [vmem:[#allocation7] sm:$0xff] %v66
    // Predicated region
    $region22: #{tpu_custom_call.1} parent=1 // pred_check
      _
    $region23: #{tpu_custom_call.1} parent=1 // pred_check_branch
      %69 = sbr.rel (0) target = $region25
    $region24: #{tpu_custom_call.1} parent=1 // pred_region
      %s71 = ssub.s32 128, 128
      %72 = vsyncadd [#allocation4], %s71
      %s74 = sshll.u32 [#allocation7], 4
      %s75 = int_to_ptr.vmem [resolvable:$true] %s74
      %77 = dma.vmem_to_hbm [thread:$0]  %s75, 128, %s2, [#allocation4]
    $region25: #{tpu_custom_call.1} parent=1 // pred_fallthru
      _
    // Predicated region
    $region26: #{tpu_custom_call.1} parent=1 // pred_check
      _
    $region27: #{tpu_custom_call.1} parent=1 // pred_check_branch
      %79 = sbr.rel (0) target = $region29
    $region28: #{tpu_custom_call.1} parent=1 // pred_region
      %80 = dma.done [#allocation4], 128
    $region29: #{tpu_custom_call.1} parent=1 // pred_fallthru
      _
    %81 = vsyncpa [#allocation3], 1
    %82 = vsyncpa [#allocation6], 1
    %83 = vsyncpa [#allocation4], 1

</llo_original>
